<compile_context>
chip_gen: v5e
topology: v5e:2x2
jax: 0.10.0
libtpu: 0.0.40
codegen_flags: <defaults>
</compile_context>

<pallas_src>
import functools

import jax
import jax.numpy as jnp
from jax.experimental import pallas as pl
from jax.experimental.pallas import tpu as pltpu


def _tv_kernel(x_ref, o_ref, carry_ref, *, H, TH, C, NT, inv_nw, inv_nh,
               exact, use_roll, compute_dtype):
    i = pl.program_id(1)

    # Per-batch accumulator lives in the (1,1,1) output block, VMEM-resident
    # across the row-tile axis; zero it on the first tile of each batch.
    @pl.when(i == 0)
    def _init():
        o_ref[...] = jnp.zeros_like(o_ref)

    x = x_ref[0].astype(compute_dtype)                    # (TH, WC)
    WC = x.shape[1]

    def _sum32(v):
        return jnp.sum(v, dtype=jnp.float32)

    def _full_tile_sums():
        # Every row of this tile is a real image row -> no dynamic masking.
        if use_roll:
            # XLU rotates instead of misaligned lane/sublane slices.  The full
            # |x - roll(x)| sum counts every valid neighbor pair once plus the
            # wrapped pairs; the wrapped contribution (same value under either
            # rotate-direction convention) is removed with tiny slices.
            xw = pltpu.roll(x, shift=WC - C, axis=1)
            xh = pltpu.roll(x, shift=TH - 1, axis=0)
            sw = _sum32(jnp.abs(x - xw)) - _sum32(jnp.abs(x[:, :C] - x[:, WC - C:]))
            sh = _sum32(jnp.abs(x - xh)) - _sum32(jnp.abs(x[:1, :] - x[TH - 1:, :]))
        else:
            sw = _sum32(jnp.abs(x[:, :WC - C] - x[:, C:]))
            sh = _sum32(jnp.abs(x[:-1, :] - x[1:, :]))
        return sw, sh

    def _acc(sw, sh):
        o_ref[...] += sw * inv_nw + sh * inv_nh

    if exact:
        _acc(*_full_tile_sums())
    else:
        @pl.when(i < NT - 1)
        def _interior():
            _acc(*_full_tile_sums())

        @pl.when(i == NT - 1)
        def _tail():
            # Only the padded tail tile pays for per-element masking.
            row = jax.lax.broadcasted_iota(jnp.int32, (TH, 1), 0)
            h = i * TH + row                               # global row index
            dw = jnp.abs(x[:, :WC - C] - x[:, C:])
            dw = jnp.where(h < H, dw, 0.0)
            dh = jnp.abs(x[:-1, :] - x[1:, :])
            dh = jnp.where(h[:-1] + 1 < H, dh, 0.0)
            _acc(_sum32(dw), _sum32(dh))

    # Row pair straddling two consecutive row-tiles of the same image.
    @pl.when(i > 0)
    def _straddle():
        db = jnp.abs(carry_ref[...] - x[:1, :])
        o_ref[...] += _sum32(db) * inv_nh

    # Carry this tile's last row to the next (sequential along i) grid step.
    carry_ref[...] = x[TH - 1:, :]


def tv_loss(pred, *, tile_h=1024, tile_bytes=6 * 1024 * 1024):
    """Total-variation loss of a [B, H, W, C] image batch. Returns scalar f32."""
    B, H, W, C = pred.shape
    if H < 2 or W < 2:
        raise ValueError("TV loss needs H >= 2 and W >= 2")
    WC = W * C
    x = pred.reshape(B, H, WC)  # free reshape of contiguous data, no pad/copy

    # bf16 stays bf16 on the VALU (v6e/v7x); everything else computes in f32.
    if pred.dtype == jnp.bfloat16:
        compute_dtype, cd_itemsize = jnp.bfloat16, 2
    else:
        compute_dtype, cd_itemsize = jnp.float32, 4

    # Row-tile: multiple of 8 (BlockSpec sublane rule), capped by the VMEM
    # byte budget; a full-H block is always legal even when H % 8 != 0.
    bytes_per_row = max(WC * cd_itemsize, 1)
    max_rows = max(8, (tile_bytes // bytes_per_row) // 8 * 8)
    TH = min(max(8, (tile_h // 8) * 8), max_rows)
    if TH >= H:
        TH = H
    NT = pl.cdiv(H, TH)
    exact = (H % TH) == 0
    # pltpu.roll fast path only where lane/sublane alignment is guaranteed;
    # otherwise use the (always supported) slice-diff path.
    use_roll = (WC % 128 == 0) and (TH % 8 == 0) and (TH >= 2)

    n_w = B * H * (W - 1) * C   # element count of torch h_diff
    n_h = B * (H - 1) * W * C   # element count of torch w_diff

    # Scoped-VMEM budget: double-buffered input tile + in-kernel temporaries.
    in_tile = TH * WC * pred.dtype.itemsize
    cd_tile = TH * WC * cd_itemsize
    vmem_limit = int(2 * in_tile + 6 * cd_tile + (2 << 20))
    vmem_limit = min(max(vmem_limit, 32 << 20), 96 << 20)

    kernel = functools.partial(
        _tv_kernel, H=H, TH=TH, C=C, NT=NT,
        inv_nw=1.0 / n_w, inv_nh=1.0 / n_h,
        exact=exact, use_roll=use_roll, compute_dtype=compute_dtype)

    partials = pl.pallas_call(
        kernel,
        out_shape=jax.ShapeDtypeStruct((B, 1, 1), jnp.float32),
        grid_spec=pltpu.PrefetchScalarGridSpec(
            num_scalar_prefetch=0,
            grid=(B, NT),
            in_specs=[pl.BlockSpec((1, TH, WC), lambda b, i: (b, i, 0))],
            out_specs=pl.BlockSpec((1, 1, 1), lambda b, i: (b, 0, 0)),
            scratch_shapes=[pltpu.VMEM((1, WC), compute_dtype)],
        ),
        compiler_params=pltpu.CompilerParams(
            # Batch axis is embarrassingly parallel (per-batch output block +
            # i==0 carry guard); the row-tile axis carries the accumulator and
            # the cross-tile row, so it must stay "arbitrary".
            dimension_semantics=("parallel", "arbitrary"),
            vmem_limit_bytes=vmem_limit,
        ),
    )(x)
    return jnp.sum(partials)


class TVLoss:
    """Mirror of the PyTorch module: __call__(pred[B, H, W, 3]) -> scalar."""

    def __call__(self, pred):
        return tv_loss(pred)


def _tv_ref(pred):
    h_diff = pred[..., :, :-1, :] - pred[..., :, 1:, :]
    w_diff = pred[..., :-1, :, :] - pred[..., 1:, :, :]
    return jnp.mean(jnp.abs(h_diff)) + jnp.mean(jnp.abs(w_diff))


if __name__ == "__main__":
    key = jax.random.PRNGKey(0)
    k1, k2 = jax.random.split(key)

    loss_fn = TVLoss()

    # Case 1: small module-typical shape [batch=2, H=16, W=16, C=3]: one full-H
    # tile per batch, maskless exact path.
    pred1 = jax.random.normal(k1, (2, 16, 16, 3), dtype=jnp.float32)
    loss1 = jax.block_until_ready(loss_fn(pred1))
    ref1 = _tv_ref(pred1)
    assert jnp.allclose(loss1, ref1, rtol=1e-5, atol=1e-5), (loss1, ref1)

    # Case 2: forces several row-tiles plus a partial tail tile, exercising the
    # maskless interior path, the pl.when-gated masked tail path, and the
    # cross-tile carry.
    pred2 = jax.random.normal(k2, (2, 36, 12, 3), dtype=jnp.float32)
    loss2 = jax.block_until_ready(tv_loss(pred2, tile_h=8))
    ref2 = _tv_ref(pred2)
    assert jnp.allclose(loss2, ref2, rtol=1e-5, atol=1e-5), (loss2, ref2)

    print("KERNEL_OK")
</pallas_src>

<mosaic_0001>
module attributes {stable_mosaic.version = 11 : i64} {
  func.func @_tv_kernel(%arg0: i32, %arg1: i32, %arg2: memref<1x16x48xf32, #tpu.memory_space<vmem>>, %arg3: memref<1x1x1xf32, #tpu.memory_space<vmem>>, %arg4: memref<1x48xf32, #tpu.memory_space<vmem>>) attributes {dimension_semantics = [#tpu.dimension_semantics<parallel>, #tpu.dimension_semantics<arbitrary>], iteration_bounds = array<i64: 2, 1>, scalar_prefetch = 0 : i64, scratch_operands = 1 : i64, tpu.core_type = #tpu.core_type<tc>, window_params = [{transform_indices = @transform_0, window_bounds = array<i64: 1, 16, 48>}, {transform_indices = @transform_1, window_bounds = array<i64: 1, 1, 1>}]} {
    %c0_i32 = arith.constant 0 : i32
    %0 = arith.cmpi eq, %arg1, %c0_i32 : i32
    %1 = arith.extui %0 : i1 to i32
    %c0_i32_0 = arith.constant 0 : i32
    %2 = arith.cmpi ne, %1, %c0_i32_0 : i32
    scf.if %2 {
      %cst_16 = arith.constant 0.000000e+00 : f32
      %33 = vector.broadcast %cst_16 : f32 to vector<1x1x1xf32>
      %c0_17 = arith.constant 0 : index
      %c0_18 = arith.constant 0 : index
      %c0_19 = arith.constant 0 : index
      %34 = vector.load %arg3[%c0_17, %c0_18, %c0_19] : memref<1x1x1xf32, #tpu.memory_space<vmem>>, vector<1x1x1xf32>
      tpu.vector_store %arg3[%c0_17, %c0_18, %c0_19], %33 {strides = array<i32>} : memref<1x1x1xf32, #tpu.memory_space<vmem>>, vector<1x1x1xf32>,
    } else {
    }
    %c0 = arith.constant 0 : index
    %c0_1 = arith.constant 0 : index
    %c0_2 = arith.constant 0 : index
    %3 = vector.load %arg2[%c0, %c0_1, %c0_2] : memref<1x16x48xf32, #tpu.memory_space<vmem>>, vector<1x16x48xf32>
    %4 = vector.shape_cast %3 : vector<1x16x48xf32> to vector<16x48xf32>
    %5 = vector.extract_strided_slice %4 {offsets = [0, 0], sizes = [16, 45], strides = [1, 1]} : vector<16x48xf32> to vector<16x45xf32>
    %6 = vector.extract_strided_slice %4 {offsets = [0, 3], sizes = [16, 45], strides = [1, 1]} : vector<16x48xf32> to vector<16x45xf32>
    %7 = arith.subf %5, %6 : vector<16x45xf32>
    %8 = math.absf %7 : vector<16x45xf32>
    %9 = vector.shape_cast %8 : vector<16x45xf32> to vector<1x16x45xf32>
    %cst = arith.constant dense<0.000000e+00> : vector<1xf32>
    %10 = vector.multi_reduction <add>, %9, %cst [1, 2] : vector<1x16x45xf32> to vector<1xf32>
    %11 = vector.shape_cast %10 : vector<1xf32> to vector<1x1x1xf32>
    %12 = vector.extract %11[0, 0, 0] : f32 from vector<1x1x1xf32>
    %13 = vector.extract_strided_slice %4 {offsets = [0, 0], sizes = [15, 48], strides = [1, 1]} : vector<16x48xf32> to vector<15x48xf32>
    %14 = vector.extract_strided_slice %4 {offsets = [1, 0], sizes = [15, 48], strides = [1, 1]} : vector<16x48xf32> to vector<15x48xf32>
    %15 = arith.subf %13, %14 : vector<15x48xf32>
    %16 = math.absf %15 : vector<15x48xf32>
    %17 = vector.shape_cast %16 : vector<15x48xf32> to vector<1x15x48xf32>
    %cst_3 = arith.constant dense<0.000000e+00> : vector<1xf32>
    %18 = vector.multi_reduction <add>, %17, %cst_3 [1, 2] : vector<1x15x48xf32> to vector<1xf32>
    %19 = vector.shape_cast %18 : vector<1xf32> to vector<1x1x1xf32>
    %20 = vector.extract %19[0, 0, 0] : f32 from vector<1x1x1xf32>
    %c0_4 = arith.constant 0 : index
    %c0_5 = arith.constant 0 : index
    %c0_6 = arith.constant 0 : index
    %21 = vector.load %arg3[%c0_4, %c0_5, %c0_6] : memref<1x1x1xf32, #tpu.memory_space<vmem>>, vector<1x1x1xf32>
    %cst_7 = arith.constant 6.94444461E-4 : f32
    %22 = arith.mulf %12, %cst_7 : f32
    %cst_8 = arith.constant 6.94444461E-4 : f32
    %23 = arith.mulf %20, %cst_8 : f32
    %24 = arith.addf %22, %23 : f32
    %25 = vector.broadcast %24 : f32 to vector<1x1x1xf32>
    %26 = arith.addf %21, %25 : vector<1x1x1xf32>
    %c0_9 = arith.constant 0 : index
    %c0_10 = arith.constant 0 : index
    %c0_11 = arith.constant 0 : index
    %27 = vector.load %arg3[%c0_9, %c0_10, %c0_11] : memref<1x1x1xf32, #tpu.memory_space<vmem>>, vector<1x1x1xf32>
    tpu.vector_store %arg3[%c0_9, %c0_10, %c0_11], %26 {strides = array<i32>} : memref<1x1x1xf32, #tpu.memory_space<vmem>>, vector<1x1x1xf32>,
    %c0_i32_12 = arith.constant 0 : i32
    %28 = arith.cmpi sgt, %arg1, %c0_i32_12 : i32
    %29 = arith.extui %28 : i1 to i32
    %c0_i32_13 = arith.constant 0 : i32
    %30 = arith.cmpi ne, %29, %c0_i32_13 : i32
    scf.if %30 {
      %c0_16 = arith.constant 0 : index
      %c0_17 = arith.constant 0 : index
      %33 = vector.load %arg4[%c0_16, %c0_17] : memref<1x48xf32, #tpu.memory_space<vmem>>, vector<1x48xf32>
      %34 = vector.extract_strided_slice %4 {offsets = [0, 0], sizes = [1, 48], strides = [1, 1]} : vector<16x48xf32> to vector<1x48xf32>
      %35 = arith.subf %33, %34 : vector<1x48xf32>
      %36 = math.absf %35 : vector<1x48xf32>
      %c0_18 = arith.constant 0 : index
      %c0_19 = arith.constant 0 : index
      %c0_20 = arith.constant 0 : index
      %37 = vector.load %arg3[%c0_18, %c0_19, %c0_20] : memref<1x1x1xf32, #tpu.memory_space<vmem>>, vector<1x1x1xf32>
      %38 = vector.shape_cast %36 : vector<1x48xf32> to vector<1x1x48xf32>
      %cst_21 = arith.constant dense<0.000000e+00> : vector<1xf32>
      %39 = vector.multi_reduction <add>, %38, %cst_21 [1, 2] : vector<1x1x48xf32> to vector<1xf32>
      %40 = vector.shape_cast %39 : vector<1xf32> to vector<1x1x1xf32>
      %41 = vector.extract %40[0, 0, 0] : f32 from vector<1x1x1xf32>
      %cst_22 = arith.constant 6.94444461E-4 : f32
      %42 = arith.mulf %41, %cst_22 : f32
      %43 = vector.broadcast %42 : f32 to vector<1x1x1xf32>
      %44 = arith.addf %37, %43 : vector<1x1x1xf32>
      %c0_23 = arith.constant 0 : index
      %c0_24 = arith.constant 0 : index
      %c0_25 = arith.constant 0 : index
      %45 = vector.load %arg3[%c0_23, %c0_24, %c0_25] : memref<1x1x1xf32, #tpu.memory_space<vmem>>, vector<1x1x1xf32>
      tpu.vector_store %arg3[%c0_23, %c0_24, %c0_25], %44 {strides = array<i32>} : memref<1x1x1xf32, #tpu.memory_space<vmem>>, vector<1x1x1xf32>,
    } else {
    }
    %31 = vector.extract_strided_slice %4 {offsets = [15, 0], sizes = [1, 48], strides = [1, 1]} : vector<16x48xf32> to vector<1x48xf32>
    %c0_14 = arith.constant 0 : index
    %c0_15 = arith.constant 0 : index
    %32 = vector.load %arg4[%c0_14, %c0_15] : memref<1x48xf32, #tpu.memory_space<vmem>>, vector<1x48xf32>
    tpu.vector_store %arg4[%c0_14, %c0_15], %31 {strides = array<i32>} : memref<1x48xf32, #tpu.memory_space<vmem>>, vector<1x48xf32>,
    return
  }
  func.func @transform_0(%arg0: i32, %arg1: i32) -> (i32, i32, i32) {
    %c0_i32 = arith.constant 0 : i32
    %c0_i32_0 = arith.constant 0 : i32
    return %arg0, %arg1, %c0_i32 : i32, i32, i32
  }
  func.func @transform_1(%arg0: i32, %arg1: i32) -> (i32, i32, i32) {
    %c0_i32 = arith.constant 0 : i32
    %c0_i32_0 = arith.constant 0 : i32
    %c0_i32_1 = arith.constant 0 : i32
    return %arg0, %c0_i32, %c0_i32_0 : i32, i32, i32
  }
}

</mosaic_0001>

<llo_original>
// kernel: tpu_custom_call.1
$region0: #{tpu_custom_call.1}
  #allocation0 [shape = 'u32[]', space=smem, size = 0x4, offset = 0x4, fixed_abs, tag = 'smem constant byte address 0x4 - core index']
  #allocation1 [shape = 'u32[72,128]{1,0:T(1,128)}', space=vmem, size = 0x9000, scoped, tag = 'internal scratch']
  #allocation2 [shape = 'f32[1,48]{1,0:T(1,128)}', space=vmem, size = 0x200, scoped, tag = 'scratch operand']
  %s0 = inlined_call_operand.hbm [shape: f32[2,16,48], index: 0, kind: input, shape index: {}]
  %s1 = inlined_call_operand.vmem [shape: f32[2,1,1], index: 1, kind: output, shape index: {}]
  %s2 = sld [smem:[#allocation0]]
  $region49: #{tpu_custom_call.1} parent=0
    _
  %s4 = ssub.s32 1, %s2
  %s5 = scalar_select 0, %s4, %s2
  $region1: #{tpu_custom_call.1} parent=0
    #allocation3 [shape = 'u8[16384]{0}', space=vmem, size = 0x4000, scoped, tag = 'input window, operand 0']
    #allocation4 [shape = 's32[2]{0}', space=sflag, size = 0x8, scoped, tag = 'scoped memory for tpu_custom_call.1']
    %6 = vsyncpa [#allocation4], 0
    %s7 = scalar_lea.sflag [#allocation4], 1
    %8 = vsyncpa %s7, 0
    loop: start=0, step=1, limit=4
    $region2: #{tpu_custom_call.1} parent=1 // loop_pre_header
      _
    $region3: #{tpu_custom_call.1} parent=1 // loop_header
      %s10 = sphi 0, %s14
      %p11 = scmp.ge.s32.totalorder %s10, 4
      %s17 = sphi 0, %s29
      %s18 = sphi 0, %s25
      %s19 = sphi 0, %s17
      %s20 = sphi 0, %s18
      %s21 = sphi 0, %s19
      %s22 = sphi 0, %s20
      %s34 = sphi 0, %s36
      %s37 = sphi 0, %s34
      %s38 = sphi 0, %s37
      %s54 = sphi 0, %s38
      %s60 = sphi 0, %s62
      %s63 = sphi 0, %s60
      %s64 = sphi 0, %s63
      %s80 = sphi 0, %s64
    $region4: #{tpu_custom_call.1} parent=1 // loop_header_branch
      %13 = sbr.rel (%p11) target = $region8
    $region5: #{tpu_custom_call.1} parent=1 // loop_body
      %s15 = ssub.s32 %s10, 1
      %s16 = ssub.s32 %s10, 2
      %s23 = sadd.s32 1, %s18
      %p24 = scmp.ge.s32.totalorder %s23, 1
      %s25 = scalar_select %p24, 0, %s23
      %s26 = sadd.s32 1, %s17
      %s27 = scalar_select %p24, %s26, %s17
      %p28 = scmp.ge.s32.totalorder %s27, 2
      %s29 = scalar_select %p28, 0, %s27
      %s30 = ssub.s32 %s17, %s29
      %s31 = ssub.s32 %s18, %s25
      %s32 = sor.u32 %s30, %s31
      %p33 = scmp.eq.s32.totalorder %s32, 0
      %s35 = sadd.s32 %s34, 1
      %s36 = scalar_select %p33, %s34, %s35
      %p39 = pneg %p33
      %p40 = scmp.eq.s32.totalorder %s10, 1
      %p41 = por %p39, %p40
      %p42 = scmp.ne.s32.totalorder %s34, %s37
      %p43 = scmp.eq.s32.totalorder %s10, 0
      %p44 = por %p42, %p43
      %p45 = scmp.ne.s32.totalorder %s34, %s37
      %p46 = scmp.eq.s32.totalorder %s15, 1
      %p47 = por %p45, %p46
      %p48 = scmp.ne.s32.totalorder %s37, %s38
      %p49 = scmp.eq.s32.totalorder %s15, 0
      %p50 = por %p48, %p49
      %p51 = scmp.ne.s32.totalorder %s37, %s38
      %p52 = scmp.eq.s32.totalorder %s16, 1
      %p53 = por %p51, %p52
      %p55 = scmp.ne.s32.totalorder %s38, %s54
      %p56 = scmp.eq.s32.totalorder %s16, 0
      %p57 = por %p55, %p56
      %s58 = ssub.s32 %s17, %s29
      %p59 = scmp.eq.s32.totalorder %s58, 0
      %s61 = sadd.s32 %s60, 1
      %s62 = scalar_select %p59, %s60, %s61
      %p65 = pneg %p59
      %p66 = scmp.eq.s32.totalorder %s10, 1
      %p67 = por %p65, %p66
      %p68 = scmp.ne.s32.totalorder %s60, %s63
      %p69 = scmp.eq.s32.totalorder %s10, 0
      %p70 = por %p68, %p69
      %p71 = scmp.ne.s32.totalorder %s60, %s63
      %p72 = scmp.eq.s32.totalorder %s15, 1
      %p73 = por %p71, %p72
      %p74 = scmp.ne.s32.totalorder %s63, %s64
      %p75 = scmp.eq.s32.totalorder %s15, 0
      %p76 = por %p74, %p75
      %p77 = scmp.ne.s32.totalorder %s63, %s64
      %p78 = scmp.eq.s32.totalorder %s16, 1
      %p79 = por %p77, %p78
      %p81 = scmp.ne.s32.totalorder %s64, %s80
      %p82 = scmp.eq.s32.totalorder %s16, 0
      %p83 = por %p81, %p82
      %p84 = scmp.le.s32.totalorder 1, %s10
      %p85 = scmp.lt.s32.totalorder %s10, 3
      %p86 = pnand %p84, %p85
      %p87 = pneg %p86
      // Predicated region
      $region9: #{tpu_custom_call.1} parent=5 // pred_check
        _
      $region10: #{tpu_custom_call.1} parent=5 // pred_check_branch
        %89 = sbr.rel (%p86) target = $region12
      $region11: #{tpu_custom_call.1} parent=5 // pred_region
        %s90 = ssub.s32 %s10, 1
      $region12: #{tpu_custom_call.1} parent=5 // pred_fallthru
        _
      %p91 = scmp.lt.s32.totalorder %s10, 2
      // Predicated region
      $region13: #{tpu_custom_call.1} parent=5 // pred_check
        %p92 = pneg %p91
      $region14: #{tpu_custom_call.1} parent=5 // pred_check_branch
        %94 = sbr.rel (%p92) target = $region16
      $region15: #{tpu_custom_call.1} parent=5 // pred_region
        // Predicated region
        $region17: #{tpu_custom_call.1} parent=15 // pred_check
          %p95 = pneg %p44
        $region18: #{tpu_custom_call.1} parent=15 // pred_check_branch
          %97 = sbr.rel (%p95) target = $region20
        $region19: #{tpu_custom_call.1} parent=15 // pred_region
          %s98 = sand.u32 %s34, 1
          %s99 = scalar_lea.sflag [#allocation4], %s98
          %s100 = sand.u32 %s34, 1
          %s101 = smul.addr %s100, 16
          %s102 = scalar_lea.vmem [#allocation3], %s101
          %s103 = smul.u32 2, %s18
          %105 = vsyncadd %s99, 0
          %s106 = smul.addr %s17, 2
          %s107 = sadd.s32 %s103, %s106
          %s108 = smul.addr %s107, 8
          %s109 = scalar_lea.hbm %s0, %s108
          %s110 = sshll.u32 %s109, 4
          %s111 = int_to_ptr.hbm [resolvable:$true] %s110
          %s112 = sshll.u32 %s102, 4
          %s113 = int_to_ptr.vmem [resolvable:$true] %s112
          %118 = dma.hbm_to_vmem [thread:$0]  %s111, 256, %s113, %s99, 128, 128, 8
        $region20: #{tpu_custom_call.1} parent=15 // pred_fallthru
          _
      $region16: #{tpu_custom_call.1} parent=5 // pred_fallthru
        _
      %p119 = scmp.le.s32.totalorder 1, %s10
      %p120 = scmp.lt.s32.totalorder %s10, 3
      %p121 = pnand %p119, %p120
      %p122 = pneg %p121
      // Predicated region
      $region21: #{tpu_custom_call.1} parent=5 // pred_check
        _
      $region22: #{tpu_custom_call.1} parent=5 // pred_check_branch
        %124 = sbr.rel (%p121) target = $region24
      $region23: #{tpu_custom_call.1} parent=5 // pred_region
        %s125 = ssub.s32 %s10, 1
        %s126 = sand.u32 %s37, 1
        %s127 = scalar_lea.sflag [#allocation4], %s126
        %s128 = sand.u32 %s37, 1
        %s129 = smul.addr %s128, 16
        %s130 = scalar_lea.vmem [#allocation3], %s129
        // Predicated region
        $region25: #{tpu_custom_call.1} parent=23 // pred_check
          %p131 = pneg %p50
        $region26: #{tpu_custom_call.1} parent=23 // pred_check_branch
          %133 = sbr.rel (%p131) target = $region28
        $region27: #{tpu_custom_call.1} parent=23 // pred_region
          %135 = dma.done %s127, 256
        $region28: #{tpu_custom_call.1} parent=23 // pred_fallthru
          _
        %s136 = sand.u32 %s37, 1
        %s137 = scalar_lea.sflag [#allocation4], %s136
        %s138 = sand.u32 %s37, 1
        %s139 = smul.addr %s138, 16
        %s140 = scalar_lea.vmem [#allocation3], %s139
        %p141 = pneg %p50
        %p142 = pneg %p47
        %p143 = pneg %p76
        %p144 = pneg %p73
        %p145 = scmp.lt.s32.totalorder %s19, 1
        %s146 = scalar_select %p145, %s19, 1
        %s147 = scalar_lea.vmem %s1, %s146
        %s148 = smul.u32 2, %s20
        %p149 = scmp.lt.s32.totalorder %s19, 1
        %s150 = scalar_select %p149, %s19, 1
        %s151 = scalar_lea.vmem %s1, %s150
        %p152 = scmp.eq.s32.totalorder %s20, 0
        // Predicated region
        $region29: #{tpu_custom_call.1} parent=23 // pred_check
          %p153 = pneg %p152
        $region30: #{tpu_custom_call.1} parent=23 // pred_check_branch
          %155 = sbr.rel (%p153) target = $region32
        $region31: #{tpu_custom_call.1} parent=23 // pred_region
          %vm156 = vcmask 0
          %157 = vst.msk [vmem:[%s151] sm:$0x1] %vm156, 0.0
        $region32: #{tpu_custom_call.1} parent=23 // pred_fallthru
          _
        %v158 = vld [vmem:[%s130] sm:$0xff]
        %v159 = vld [vmem:[%s130 + $0x8] sm:$0xff]
        %162 = vrot.lane.b32.xlu0 %v158, 125
        %v163 = vpop.permute.xlu0 %162
        %164 = vrot.lane.b32.xlu0 %v159, 125
        %v165 = vpop.permute.xlu0 %164
        %v168 = vsub.f32 %v158, %v163
        %v169 = vsub.f32 %v159, %v165
        %v170 = vand.u32 2147483647, %v168
        %v171 = vand.u32 2147483647, %v169
        %vm172 = vcmask 367616
        %v173 = vsel %vm172, %v170, 0.0
        %v174 = vsel %vm172, %v171, 0.0
        %v175 = vadd.f32 %v173, %v174
        %176 = vadd.xlane.f32.xlu0 %v175
        %v177 = vpop.xlane.xlu0 %176
        %v178 = vrot.slane %v177, 4
        %v179 = vadd.f32 %v177, %v178
        %v180 = vrot.slane %v179, 2
        %v181 = vadd.f32 %v179, %v180
        %v182 = vrot.slane %v181, 1
        %v183 = vadd.f32 %v181, %v182
        %s184 = vtos %v183
        %vm185 = vcmask 1046528
        %v186 = vrot.slane %v158, 1
        %v187 = vrot.slane %v159, 1
        %v188 = vsel %vm185, %v186, %v187
        %v191 = vsub.f32 %v158, %v188
        %v192 = vsub.f32 %v159, %v187
        %v193 = vand.u32 2147483647, %v191
        %v194 = vand.u32 2147483647, %v192
        %vm195 = vcmask 392192
        %v196 = vsel %vm195, %v193, 0.0
        %vm197 = vcmask 391168
        %v198 = vsel %vm197, %v194, 0.0
        %v199 = vadd.f32 %v196, %v198
        %200 = vadd.xlane.f32.xlu0 %v199
        %v201 = vpop.xlane.xlu0 %200
        %v202 = vrot.slane %v201, 4
        %v203 = vadd.f32 %v201, %v202
        %v204 = vrot.slane %v203, 2
        %v205 = vadd.f32 %v203, %v204
        %v206 = vrot.slane %v205, 1
        %v207 = vadd.f32 %v205, %v206
        %s208 = vtos %v207
        %v209 = vld [vmem:[%s151] sm:$0x1]
        %s210 = smul.f32 %s184, 0.00069444446
        %s211 = smul.f32 %s208, 0.00069444446
        %s212 = sadd.f32 %s210, %s211
        %v213 = vstv %s212
        %v214 = vadd.f32 %v209, %v213
        %vm215 = vcmask 0
        %216 = vst.msk [vmem:[%s151] sm:$0x1] %vm215, %v214
        %p217 = scmp.gt.s32.totalorder %s20, 0
        // Predicated region
        $region33: #{tpu_custom_call.1} parent=23 // pred_check
          %p218 = pneg %p217
        $region34: #{tpu_custom_call.1} parent=23 // pred_check_branch
          %220 = sbr.rel (%p218) target = $region36
        $region35: #{tpu_custom_call.1} parent=23 // pred_region
          %v221 = vld [vmem:[#allocation2] sm:$0x1]
          %v222 = vsub.f32 %v221, %v158
          %v223 = vand.u32 2147483647, %v222
          %v224 = vld [vmem:[%s151] sm:$0x1]
          %vm225 = vcmask 385024
          %v226 = vsel %vm225, %v223, 0.0
          %227 = vadd.xlane.f32.xlu0 %v226
          %v228 = vpop.xlane.xlu0 %227
          %v229 = vrot.slane %v228, 4
          %v230 = vadd.f32 %v228, %v229
          %v231 = vrot.slane %v230, 2
          %v232 = vadd.f32 %v230, %v231
          %v233 = vrot.slane %v232, 1
          %v234 = vadd.f32 %v232, %v233
          %s235 = vtos %v234
          %s236 = smul.f32 %s235, 0.00069444446
          %v237 = vstv %s236
          %v238 = vadd.f32 %v224, %v237
          %239 = vst.msk [vmem:[%s151] sm:$0x1] %vm215, %v238
        $region36: #{tpu_custom_call.1} parent=23 // pred_fallthru
          _
        %vm240 = vcmask 392199
        %241 = vst.msk [vmem:[#allocation2 - $0x7] sm:$0x80] %vm240, %v159
        %p242 = scmp.lt.s32.totalorder %s19, 1
        %s243 = scalar_select %p242, %s19, 1
        %s244 = scalar_lea.vmem %s1, %s243
        // Predicated region
        $region37: #{tpu_custom_call.1} parent=23 // pred_check
          %p245 = pneg %p73
        $region38: #{tpu_custom_call.1} parent=23 // pred_check_branch
          %247 = sbr.rel (%p245) target = $region40
        $region39: #{tpu_custom_call.1} parent=23 // pred_region
          _
        $region40: #{tpu_custom_call.1} parent=23 // pred_fallthru
          _
      $region24: #{tpu_custom_call.1} parent=5 // pred_fallthru
        _
      %p248 = scmp.le.s32.totalorder 2, %s10
      // Predicated region
      $region41: #{tpu_custom_call.1} parent=5 // pred_check
        %p249 = pneg %p248
      $region42: #{tpu_custom_call.1} parent=5 // pred_check_branch
        %251 = sbr.rel (%p249) target = $region44
      $region43: #{tpu_custom_call.1} parent=5 // pred_region
        %s252 = ssub.s32 %s10, 2
        // Predicated region
        $region45: #{tpu_custom_call.1} parent=43 // pred_check
          %p253 = pneg %p79
        $region46: #{tpu_custom_call.1} parent=43 // pred_check_branch
          %255 = sbr.rel (%p253) target = $region48
        $region47: #{tpu_custom_call.1} parent=43 // pred_region
          %p256 = scmp.lt.s32.totalorder %s21, 1
          %s257 = scalar_select %p256, %s21, 1
          %s258 = scalar_lea.vmem %s1, %s257
        $region48: #{tpu_custom_call.1} parent=43 // pred_fallthru
          _
      $region44: #{tpu_custom_call.1} parent=5 // pred_fallthru
        _
    $region6: #{tpu_custom_call.1} parent=1 // loop_footer
      %s14 = sadd.s32 1, %s10
    $region7: #{tpu_custom_call.1} parent=1 // loop_footer_branch
      %9 = sbr.rel target = $region3
    $region8: #{tpu_custom_call.1} parent=1 // loop_exit
      _
    %259 = vsyncpa [#allocation4], 1
    %s260 = scalar_lea.sflag [#allocation4], 1
    %261 = vsyncpa %s260, 1

</llo_original>
